<compile_context>
chip_gen: v5e
topology: v5e:2x2
jax: 0.10.0
libtpu: 0.0.40
codegen_flags: <defaults>
</compile_context>

<pallas_src>
import numpy as np

import jax
import jax.numpy as jnp
from jax.experimental import pallas as pl
from jax.experimental.pallas import tpu as pltpu


def bignn_kernel(meta_ref,      # SMEM (2+Vg,) int32: [n_active, n_fallback, view_idx...]
                 x_ref,         # VMEM (tm, H) f32 : node-embedding row tile
                 fw_adj_ref,    # VMEM (tm, N) int8: row tile of fw adjacency, active view v
                 bw_adj_ref,    # VMEM (tm, N) int8: row tile of bw adjacency, active view v
                 xw_ref,        # VMEM (N, H)  bf16: precomputed X @ [W_bw | W_fw] for view v
                 w1_ref,        # VMEM (H, H)  bf16: linear1 weight (in, out)
                 b1_ref,        # VMEM (1, H)  f32 : linear1 bias
                 out_ref,       # VMEM (tm, H)     : output row tile
                 acc_ref):      # VMEM (tm, H) f32 : accumulator over views
    v = pl.program_id(1)
    H = out_ref.shape[1]
    H2 = H // 2

    is_first = v == 0
    is_active = v < meta_ref[0]   # only false on the padded step when no view has edges

    @pl.when(is_active)
    def _gnn():
        xw = xw_ref[...]                                     # (N, H) bf16
        bw_a = bw_adj_ref[...].astype(jnp.bfloat16)          # 0/1 -> exact upcast
        fw_a = fw_adj_ref[...].astype(jnp.bfloat16)
        h_bw = jnp.dot(bw_a, xw[:, :H2],
                       preferred_element_type=jnp.float32)   # (tm, H2)
        h_fw = jnp.dot(fw_a, xw[:, H2:],
                       preferred_element_type=jnp.float32)   # (tm, H2)
        upd = jnp.concatenate([h_bw, h_fw], axis=-1)         # (tm, H) f32, lane-dense

        @pl.when(is_first)
        def _write_first():
            acc_ref[...] = upd                               # no zero-store + RMW

        @pl.when(jnp.logical_not(is_first))
        def _accumulate():
            acc_ref[...] += upd

    @pl.when(jnp.logical_and(is_first, jnp.logical_not(is_active)))
    def _init_empty():
        # Only reachable when no view has edges at all (degenerate padded grid).
        acc_ref[...] = jnp.zeros_like(acc_ref)

    @pl.when(v == pl.num_programs(1) - 1)
    def _finalize():
        x_rows = x_ref[...]                                  # (tm, H) f32
        n_fb = meta_ref[1].astype(jnp.float32)
        summed = acc_ref[...] + n_fb * x_rows                # fallback views contribute X
        acted = jnp.maximum(summed, 0.0)                     # act = ReLU
        feats = jnp.dot(acted.astype(jnp.bfloat16), w1_ref[...],
                        preferred_element_type=jnp.float32)
        out_ref[...] = (feats + b1_ref[...] + x_rows).astype(out_ref.dtype)


def _pick_tiling(n, h, out_itemsize):
    """VMEM-aware row-tile size and vmem limit for the current TPU generation."""
    try:
        cap = pltpu.get_tpu_info().vmem_capacity_bytes       # 128 MiB v5e/v6e, 64 MiB v7x
    except Exception:
        cap = 64 * 1024 * 1024                               # conservative (v7x) default
    vmem_limit = max(min(int(cap * 0.85), 112 * 1024 * 1024), 32 * 1024 * 1024)
    budget = int(vmem_limit * 0.85)

    # Blocks that do not scale with tm: XW (N,H) bf16 double-buffered, W1, b1.
    fixed = 2 * n * h * 2 + h * h * 2 + h * 4

    def per_step(tm):
        adj = 2 * 2 * tm * n * 1              # 2 dirs x 2 bufs x (tm, N) int8
        x = 2 * tm * h * 4                    # (tm, H) f32 x 2 bufs
        out = 2 * tm * h * out_itemsize       # (tm, H) out x 2 bufs
        acc = tm * h * 4                      # f32 scratch
        return adj + x + out + acc

    candidates = [t for t in (2048, 1024, 512, 256, 128, 64, 32, 16, 8)
                  if t <= n and n % t == 0]
    if not candidates:
        candidates = [n]
    for tm in candidates:                     # largest tile that fits the budget
        if fixed + per_step(tm) <= budget:
            return tm, vmem_limit
    return candidates[-1], vmem_limit         # fall back to smallest divisor


def bignn_forward(embs, fw_adjs, bw_adjs, w_fw, w_bw, w1, b1):
    """embs: (N, H) f32; fw_adjs/bw_adjs: (V, N, N); w_fw/w_bw: (V, H, H//2);
    w1: (H, H) in (in, out) layout; b1: (1, H)."""
    N, H = embs.shape
    V = fw_adjs.shape[0]
    assert H % 2 == 0

    # --- View compaction: only active views (edges in BOTH directions) enter the
    #     grid, so empty-view adjacency slabs are never DMA'd.  The fallback
    #     contribution of empty views (out_i = X) is folded into finalize.
    fw_np = np.asarray(jax.device_get(fw_adjs))
    bw_np = np.asarray(jax.device_get(bw_adjs))
    has_edges = np.logical_and(fw_np.reshape(V, -1).any(axis=1),
                               bw_np.reshape(V, -1).any(axis=1))
    active = np.nonzero(has_edges)[0].astype(np.int32)
    num_active = int(active.size)
    n_fallback = int(V - num_active)
    vg = max(num_active, 1)
    meta_np = np.zeros((2 + vg,), np.int32)
    meta_np[0] = num_active
    meta_np[1] = n_fallback
    meta_np[2:2 + num_active] = active
    meta = jnp.asarray(meta_np)

    # --- Hoisted per-view input projection XW = X @ [W_bw | W_fw]  -> (V, N, H).
    #     Computed in f32, cast once to bf16 (tighter than in-kernel bf16 chain).
    wcat = jnp.concatenate([w_bw, w_fw], axis=-1)                 # (V, H, H) f32
    xw = jnp.einsum('nh,vhk->vnk', embs, wcat).astype(jnp.bfloat16)

    x_f32 = embs.astype(jnp.float32)
    fw_i8 = fw_adjs.astype(jnp.int8)      # adjacency is 0/1 -> exact in 1 byte
    bw_i8 = bw_adjs.astype(jnp.int8)
    w1_b = w1.astype(jnp.bfloat16)
    b1_f = b1.reshape(1, H).astype(jnp.float32)

    tm, vmem_limit = _pick_tiling(N, H, embs.dtype.itemsize)
    grid = (N // tm, vg)

    return pl.pallas_call(
        bignn_kernel,
        out_shape=jax.ShapeDtypeStruct((N, H), embs.dtype),
        grid_spec=pltpu.PrefetchScalarGridSpec(
            num_scalar_prefetch=1,
            grid=grid,
            in_specs=[
                pl.BlockSpec((tm, H), lambda m, v, md: (m, 0)),            # X rows
                pl.BlockSpec((pl.Squeezed(), tm, N),
                             lambda m, v, md: (md[2 + v], m, 0)),          # fw adj rows
                pl.BlockSpec((pl.Squeezed(), tm, N),
                             lambda m, v, md: (md[2 + v], m, 0)),          # bw adj rows
                pl.BlockSpec((pl.Squeezed(), N, H),
                             lambda m, v, md: (md[2 + v], 0, 0)),          # XW for view v
                pl.BlockSpec((H, H), lambda m, v, md: (0, 0)),             # linear1 W
                pl.BlockSpec((1, H), lambda m, v, md: (0, 0)),             # linear1 b
            ],
            out_specs=pl.BlockSpec((tm, H), lambda m, v, md: (m, 0)),
            scratch_shapes=[pltpu.VMEM((tm, H), jnp.float32)],
        ),
        compiler_params=pltpu.CompilerParams(
            dimension_semantics=("parallel", "arbitrary"),
            vmem_limit_bytes=vmem_limit),
    )(meta, x_f32, fw_i8, bw_i8, xw, w1_b, b1_f)


def bignn_reference(embs, fw_adjs, bw_adjs, w_fw, w_bw, w1, b1):
    """Pure-JAX f32 reference mirroring the torch module semantics."""
    V = fw_adjs.shape[0]
    outs = []
    for i in range(V):
        fw = fw_adjs[i] @ (embs @ w_fw[i])
        bw = bw_adjs[i] @ (embs @ w_bw[i])
        out_i = jnp.concatenate([bw, fw], axis=-1)
        has = jnp.logical_and(jnp.any(fw_adjs[i] != 0), jnp.any(bw_adjs[i] != 0))
        outs.append(jnp.where(has, out_i, embs))
    summed = sum(outs)
    return jnp.maximum(summed, 0.0) @ w1 + b1 + embs


if __name__ == "__main__":
    # Small shapes: V views, N nodes (spans), H = span_emb_size
    V, N, H = 3, 8, 32
    H2 = H // 2

    key = jax.random.PRNGKey(0)
    k_emb, k_fw, k_wfw, k_wbw, k_w1, k_b1 = jax.random.split(key, 6)

    embs = jax.random.normal(k_emb, (N, H), dtype=jnp.float32)

    # Dense 0/1 adjacency matrices per view; the last view is made empty to
    # exercise the torch "no edges -> dropout(inps)" fallback path.
    fw_adjs = (jax.random.uniform(k_fw, (V, N, N)) > 0.6).astype(jnp.float32)
    fw_adjs = fw_adjs.at[V - 1].set(0.0)
    bw_adjs = jnp.transpose(fw_adjs, (0, 2, 1))   # backward = reversed edges

    # Deterministic parameter init (synthetic; no checkpoint load).
    w_fw = 0.1 * jax.random.normal(k_wfw, (V, H, H2), dtype=jnp.float32)
    w_bw = 0.1 * jax.random.normal(k_wbw, (V, H, H2), dtype=jnp.float32)
    w1 = 0.1 * jax.random.normal(k_w1, (H, H), dtype=jnp.float32)
    b1 = 0.01 * jax.random.normal(k_b1, (1, H), dtype=jnp.float32)

    out = bignn_forward(embs, fw_adjs, bw_adjs, w_fw, w_bw, w1, b1)
    out = jax.block_until_ready(out)

    ref = bignn_reference(embs, fw_adjs, bw_adjs, w_fw, w_bw, w1, b1)
    assert out.shape == (N, H)
    # bf16 MXU inputs vs pure-f32 reference -> loosened tolerance.
    assert jnp.allclose(out, ref, atol=5e-2, rtol=5e-2), "mismatch vs reference"

    print("KERNEL_OK")
</pallas_src>

<mosaic_0001>
module attributes {stable_mosaic.version = 11 : i64} {
  func.func @bignn_kernel(%arg0: i32, %arg1: i32, %arg2: memref<4xi32, #tpu.memory_space<smem>>, %arg3: memref<8x32xf32, #tpu.memory_space<vmem>>, %arg4: memref<1x8x8xi8, #tpu.memory_space<vmem>>, %arg5: memref<1x8x8xi8, #tpu.memory_space<vmem>>, %arg6: memref<1x8x32xbf16, #tpu.memory_space<vmem>>, %arg7: memref<32x32xbf16, #tpu.memory_space<vmem>>, %arg8: memref<1x32xf32, #tpu.memory_space<vmem>>, %arg9: memref<8x32xf32, #tpu.memory_space<vmem>>, %arg10: memref<8x32xf32, #tpu.memory_space<vmem>>) attributes {dimension_semantics = [#tpu.dimension_semantics<parallel>, #tpu.dimension_semantics<arbitrary>], iteration_bounds = array<i64: 1, 2>, scalar_prefetch = 1 : i64, scratch_operands = 1 : i64, tpu.core_type = #tpu.core_type<tc>, window_params = [{transform_indices = @transform_0, window_bounds = array<i64: 8, 32>}, {transform_indices = @transform_1, window_bounds = array<i64: 1, 8, 8>}, {transform_indices = @transform_2, window_bounds = array<i64: 1, 8, 8>}, {transform_indices = @transform_3, window_bounds = array<i64: 1, 8, 32>}, {pipeline_mode = #tpu.pipeline_mode<synchronous>, transform_indices = @transform_4, window_bounds = array<i64: 32, 32>}, {pipeline_mode = #tpu.pipeline_mode<synchronous>, transform_indices = @transform_5, window_bounds = array<i64: 1, 32>}, {transform_indices = @transform_6, window_bounds = array<i64: 8, 32>}]} {
    %c0_i32 = arith.constant 0 : i32
    %0 = arith.cmpi eq, %arg1, %c0_i32 : i32
    %c0 = arith.constant 0 : index
    %1 = memref.load %arg2[%c0] : memref<4xi32, #tpu.memory_space<smem>>
    %2 = arith.cmpi slt, %arg1, %1 : i32
    %3 = arith.extui %2 : i1 to i32
    %c0_i32_0 = arith.constant 0 : i32
    %4 = arith.cmpi ne, %3, %c0_i32_0 : i32
    scf.if %4 {
      %c0_3 = arith.constant 0 : index
      %c0_4 = arith.constant 0 : index
      %c0_5 = arith.constant 0 : index
      %12 = vector.load %arg6[%c0_3, %c0_4, %c0_5] : memref<1x8x32xbf16, #tpu.memory_space<vmem>>, vector<1x8x32xbf16>
      %13 = vector.shape_cast %12 : vector<1x8x32xbf16> to vector<8x32xbf16>
      %c0_6 = arith.constant 0 : index
      %c0_7 = arith.constant 0 : index
      %c0_8 = arith.constant 0 : index
      %14 = vector.load %arg5[%c0_6, %c0_7, %c0_8] : memref<1x8x8xi8, #tpu.memory_space<vmem>>, vector<1x8x8xi8>
      %15 = vector.shape_cast %14 : vector<1x8x8xi8> to vector<8x8xi8>
      %16 = arith.sitofp %15 : vector<8x8xi8> to vector<8x8xbf16>
      %c0_9 = arith.constant 0 : index
      %c0_10 = arith.constant 0 : index
      %c0_11 = arith.constant 0 : index
      %17 = vector.load %arg4[%c0_9, %c0_10, %c0_11] : memref<1x8x8xi8, #tpu.memory_space<vmem>>, vector<1x8x8xi8>
      %18 = vector.shape_cast %17 : vector<1x8x8xi8> to vector<8x8xi8>
      %19 = arith.sitofp %18 : vector<8x8xi8> to vector<8x8xbf16>
      %20 = vector.extract_strided_slice %13 {offsets = [0, 0], sizes = [8, 16], strides = [1, 1]} : vector<8x32xbf16> to vector<8x16xbf16>
      %cst = arith.constant dense<0.000000e+00> : vector<8x16xf32>
      %21 = tpu.matmul %16, %20, %cst {dimension_numbers = #tpu.dot_dimension_numbers<[1], [0], [0], [1], [0, 0, 1, 1], [], []>} : vector<8x8xbf16>, vector<8x16xbf16>, vector<8x16xf32> -> vector<8x16xf32>
      %22 = vector.extract_strided_slice %13 {offsets = [0, 16], sizes = [8, 16], strides = [1, 1]} : vector<8x32xbf16> to vector<8x16xbf16>
      %cst_12 = arith.constant dense<0.000000e+00> : vector<8x16xf32>
      %23 = tpu.matmul %19, %22, %cst_12 {dimension_numbers = #tpu.dot_dimension_numbers<[1], [0], [0], [1], [0, 0, 1, 1], [], []>} : vector<8x8xbf16>, vector<8x16xbf16>, vector<8x16xf32> -> vector<8x16xf32>
      %24 = tpu.concatenate %21, %23 in 1 : vector<8x16xf32>, vector<8x16xf32> -> vector<8x32xf32>
      %25 = arith.extui %0 : i1 to i32
      %c0_i32_13 = arith.constant 0 : i32
      %26 = arith.cmpi ne, %25, %c0_i32_13 : i32
      scf.if %26 {
        %c0_16 = arith.constant 0 : index
        %c0_17 = arith.constant 0 : index
        %30 = vector.load %arg10[%c0_16, %c0_17] : memref<8x32xf32, #tpu.memory_space<vmem>>, vector<8x32xf32>
        tpu.vector_store %arg10[%c0_16, %c0_17], %24 {strides = array<i32>} : memref<8x32xf32, #tpu.memory_space<vmem>>, vector<8x32xf32>,
      } else {
      }
      %true_14 = arith.constant true
      %27 = arith.xori %0, %true_14 : i1
      %28 = arith.extui %27 : i1 to i32
      %c0_i32_15 = arith.constant 0 : i32
      %29 = arith.cmpi ne, %28, %c0_i32_15 : i32
      scf.if %29 {
        %c0_16 = arith.constant 0 : index
        %c0_17 = arith.constant 0 : index
        %30 = vector.load %arg10[%c0_16, %c0_17] : memref<8x32xf32, #tpu.memory_space<vmem>>, vector<8x32xf32>
        %31 = arith.addf %30, %24 : vector<8x32xf32>
        %c0_18 = arith.constant 0 : index
        %c0_19 = arith.constant 0 : index
        %32 = vector.load %arg10[%c0_18, %c0_19] : memref<8x32xf32, #tpu.memory_space<vmem>>, vector<8x32xf32>
        tpu.vector_store %arg10[%c0_18, %c0_19], %31 {strides = array<i32>} : memref<8x32xf32, #tpu.memory_space<vmem>>, vector<8x32xf32>,
      } else {
      }
    } else {
    }
    %true = arith.constant true
    %5 = arith.xori %2, %true : i1
    %6 = arith.andi %0, %5 : i1
    %7 = arith.extui %6 : i1 to i32
    %c0_i32_1 = arith.constant 0 : i32
    %8 = arith.cmpi ne, %7, %c0_i32_1 : i32
    scf.if %8 {
      %cst = arith.constant 0.000000e+00 : f32
      %12 = vector.broadcast %cst : f32 to vector<8x32xf32>
      %c0_3 = arith.constant 0 : index
      %c0_4 = arith.constant 0 : index
      %13 = vector.load %arg10[%c0_3, %c0_4] : memref<8x32xf32, #tpu.memory_space<vmem>>, vector<8x32xf32>
      tpu.vector_store %arg10[%c0_3, %c0_4], %12 {strides = array<i32>} : memref<8x32xf32, #tpu.memory_space<vmem>>, vector<8x32xf32>,
    } else {
    }
    %c1_i32 = arith.constant 1 : i32
    %9 = arith.cmpi eq, %arg1, %c1_i32 : i32
    %10 = arith.extui %9 : i1 to i32
    %c0_i32_2 = arith.constant 0 : i32
    %11 = arith.cmpi ne, %10, %c0_i32_2 : i32
    scf.if %11 {
      %c0_3 = arith.constant 0 : index
      %c0_4 = arith.constant 0 : index
      %12 = vector.load %arg3[%c0_3, %c0_4] : memref<8x32xf32, #tpu.memory_space<vmem>>, vector<8x32xf32>
      %c1 = arith.constant 1 : index
      %13 = memref.load %arg2[%c1] : memref<4xi32, #tpu.memory_space<smem>>
      %14 = arith.sitofp %13 : i32 to f32
      %c0_5 = arith.constant 0 : index
      %c0_6 = arith.constant 0 : index
      %15 = vector.load %arg10[%c0_5, %c0_6] : memref<8x32xf32, #tpu.memory_space<vmem>>, vector<8x32xf32>
      %16 = vector.broadcast %14 : f32 to vector<8x32xf32>
      %17 = arith.mulf %16, %12 : vector<8x32xf32>
      %18 = arith.addf %15, %17 : vector<8x32xf32>
      %cst = arith.constant 0.000000e+00 : f32
      %19 = vector.broadcast %cst : f32 to vector<8x32xf32>
      %20 = arith.maximumf %18, %19 : vector<8x32xf32>
      %21 = arith.truncf %20 : vector<8x32xf32> to vector<8x32xbf16>
      %c0_7 = arith.constant 0 : index
      %c0_8 = arith.constant 0 : index
      %22 = vector.load %arg7[%c0_7, %c0_8] : memref<32x32xbf16, #tpu.memory_space<vmem>>, vector<32x32xbf16>
      %cst_9 = arith.constant dense<0.000000e+00> : vector<8x32xf32>
      %23 = tpu.matmul %21, %22, %cst_9 {dimension_numbers = #tpu.dot_dimension_numbers<[1], [0], [0], [1], [0, 0, 1, 1], [], []>} : vector<8x32xbf16>, vector<32x32xbf16>, vector<8x32xf32> -> vector<8x32xf32>
      %c0_10 = arith.constant 0 : index
      %c0_11 = arith.constant 0 : index
      %24 = vector.load %arg8[%c0_10, %c0_11] : memref<1x32xf32, #tpu.memory_space<vmem>>, vector<1x32xf32>
      %25 = vector.broadcast %24 : vector<1x32xf32> to vector<8x32xf32>
      %26 = arith.addf %23, %25 : vector<8x32xf32>
      %27 = arith.addf %26, %12 : vector<8x32xf32>
      %c0_12 = arith.constant 0 : index
      %c0_13 = arith.constant 0 : index
      %28 = vector.load %arg9[%c0_12, %c0_13] : memref<8x32xf32, #tpu.memory_space<vmem>>, vector<8x32xf32>
      tpu.vector_store %arg9[%c0_12, %c0_13], %27 {strides = array<i32>} : memref<8x32xf32, #tpu.memory_space<vmem>>, vector<8x32xf32>,
    } else {
    }
    return
  }
  func.func @transform_0(%arg0: i32, %arg1: i32, %arg2: memref<4xi32, #tpu.memory_space<smem>>) -> (i32, i32) {
    %c0_i32 = arith.constant 0 : i32
    %c0_i32_0 = arith.constant 0 : i32
    return %arg0, %c0_i32 : i32, i32
  }
  func.func @transform_1(%arg0: i32, %arg1: i32, %arg2: memref<4xi32, #tpu.memory_space<smem>>) -> (i32, i32, i32) {
    %c2_i32 = arith.constant 2 : i32
    %0 = arith.addi %c2_i32, %arg1 : i32
    %1 = arith.index_cast %0 : i32 to index
    %2 = memref.load %arg2[%1] : memref<4xi32, #tpu.memory_space<smem>>
    %c0_i32 = arith.constant 0 : i32
    %c0_i32_0 = arith.constant 0 : i32
    return %2, %arg0, %c0_i32 : i32, i32, i32
  }
  func.func @transform_2(%arg0: i32, %arg1: i32, %arg2: memref<4xi32, #tpu.memory_space<smem>>) -> (i32, i32, i32) {
    %c2_i32 = arith.constant 2 : i32
    %0 = arith.addi %c2_i32, %arg1 : i32
    %1 = arith.index_cast %0 : i32 to index
    %2 = memref.load %arg2[%1] : memref<4xi32, #tpu.memory_space<smem>>
    %c0_i32 = arith.constant 0 : i32
    %c0_i32_0 = arith.constant 0 : i32
    return %2, %arg0, %c0_i32 : i32, i32, i32
  }
  func.func @transform_3(%arg0: i32, %arg1: i32, %arg2: memref<4xi32, #tpu.memory_space<smem>>) -> (i32, i32, i32) {
    %c2_i32 = arith.constant 2 : i32
    %0 = arith.addi %c2_i32, %arg1 : i32
    %1 = arith.index_cast %0 : i32 to index
    %2 = memref.load %arg2[%1] : memref<4xi32, #tpu.memory_space<smem>>
    %c0_i32 = arith.constant 0 : i32
    %c0_i32_0 = arith.constant 0 : i32
    %c0_i32_1 = arith.constant 0 : i32
    return %2, %c0_i32, %c0_i32_0 : i32, i32, i32
  }
  func.func @transform_4(%arg0: i32, %arg1: i32, %arg2: memref<4xi32, #tpu.memory_space<smem>>) -> (i32, i32) {
    %c0_i32 = arith.constant 0 : i32
    %c0_i32_0 = arith.constant 0 : i32
    %c0_i32_1 = arith.constant 0 : i32
    return %c0_i32, %c0_i32_0 : i32, i32
  }
  func.func @transform_5(%arg0: i32, %arg1: i32, %arg2: memref<4xi32, #tpu.memory_space<smem>>) -> (i32, i32) {
    %c0_i32 = arith.constant 0 : i32
    %c0_i32_0 = arith.constant 0 : i32
    %c0_i32_1 = arith.constant 0 : i32
    return %c0_i32, %c0_i32_0 : i32, i32
  }
  func.func @transform_6(%arg0: i32, %arg1: i32, %arg2: memref<4xi32, #tpu.memory_space<smem>>) -> (i32, i32) {
    %c0_i32 = arith.constant 0 : i32
    %c0_i32_0 = arith.constant 0 : i32
    return %arg0, %c0_i32 : i32, i32
  }
}

</mosaic_0001>

<llo_original>
// kernel: tpu_custom_call.1
$region0: #{tpu_custom_call.1}
  #allocation0 [shape = 'u32[]', space=smem, size = 0x4, offset = 0x4, fixed_abs, tag = 'smem constant byte address 0x4 - core index']
  #allocation1 [shape = 'u32[72,128]{1,0:T(1,128)}', space=vmem, size = 0x9000, scoped, tag = 'internal scratch']
  #allocation2 [shape = 'f32[8,32]{1,0:T(8,128)}', space=vmem, size = 0x1000, scoped, tag = 'scratch operand']
  #allocation3 [shape = 's32[1]{0}', space=sflag, size = 0x4, scoped, tag = 'scoped memory for tpu_custom_call.1']
  #allocation4 [shape = 'u8[512]{0}', space=smem, size = 0x200, scoped, tag = 'prefetched SMEM operand 0']
  %s0 = inlined_call_operand.hbm [shape: s32[4], index: 0, kind: input, shape index: {}]
  %s1 = inlined_call_operand.hbm [shape: f32[8,32], index: 1, kind: input, shape index: {}]
  %s2 = inlined_call_operand.hbm [shape: s8[3,8,8], index: 2, kind: input, shape index: {}]
  %s3 = inlined_call_operand.hbm [shape: s8[3,8,8], index: 3, kind: input, shape index: {}]
  %s4 = inlined_call_operand.hbm [shape: bf16[3,8,32], index: 4, kind: input, shape index: {}]
  %s5 = inlined_call_operand.hbm [shape: bf16[32,32], index: 5, kind: input, shape index: {}]
  %s6 = inlined_call_operand.vmem [shape: f32[1,32], index: 6, kind: input, shape index: {}]
  %s7 = inlined_call_operand.hbm [shape: f32[8,32], index: 7, kind: output, shape index: {}]
  %s8 = sld [smem:[#allocation0]]
  $region97: #{tpu_custom_call.1} parent=0
    _
  %s10 = ssub.s32 1, %s8
  %s11 = scalar_select 0, %s10, %s8
  %s13 = sshll.u32 %s0, 4
  %s14 = int_to_ptr.hbm [resolvable:$true] %s13
  %16 = dma.hbm_to_smem %s14, 16, [#allocation4], [#allocation3]
  %18 = dma.done [#allocation3], 16
  %19 = sfence
  $region1: #{tpu_custom_call.1} parent=0
    #allocation5 [shape = 'u8[4096]{0}', space=vmem, size = 0x1000, scoped, tag = 'input window, operand 1, single buffered']
    #allocation6 [shape = 's32[2]{0}', space=sflag, size = 0x8, scoped, tag = 'scoped memory for tpu_custom_call.1']
    #allocation7 [shape = 's32[2]{0}', space=sflag, size = 0x8, scoped, tag = 'scoped memory for tpu_custom_call.1']
    #allocation8 [shape = 'u8[2048]{0}', space=vmem, size = 0x800, scoped, tag = 'input window, operand 2']
    #allocation9 [shape = 's32[2]{0}', space=sflag, size = 0x8, scoped, tag = 'scoped memory for tpu_custom_call.1']
    #allocation10 [shape = 'u8[2048]{0}', space=vmem, size = 0x800, scoped, tag = 'input window, operand 3']
    #allocation11 [shape = 'u8[4096]{0}', space=vmem, size = 0x1000, scoped, tag = 'input window, operand 4']
    #allocation12 [shape = 's32[2]{0}', space=sflag, size = 0x8, scoped, tag = 'scoped memory for tpu_custom_call.1']
    #allocation13 [shape = 'u8[8192]{0}', space=vmem, size = 0x2000, scoped, tag = 'input window, operand 5, single buffered']
    #allocation14 [shape = 'u8[4096]{0}', space=vmem, size = 0x1000, scoped, tag = 'output window, operand 0, single buffered']
    %20 = vsyncpa [#allocation6], 0
    %21 = vsyncpa [#allocation9], 0
    %s22 = scalar_lea.sflag [#allocation9], 1
    %23 = vsyncpa %s22, 0
    %24 = vsyncpa [#allocation12], 0
    %s25 = scalar_lea.sflag [#allocation12], 1
    %26 = vsyncpa %s25, 0
    %27 = vsyncpa [#allocation7], 0
    loop: start=0, step=1, limit=4
    $region2: #{tpu_custom_call.1} parent=1 // loop_pre_header
      _
    $region3: #{tpu_custom_call.1} parent=1 // loop_header
      %s29 = sphi 0, %s33
      %p30 = scmp.ge.s32.totalorder %s29, 4
      %s36 = sphi 0, %s48
      %s37 = sphi 0, %s44
      %s38 = sphi 0, %s36
      %s39 = sphi 0, %s37
      %s40 = sphi 0, %s38
      %s41 = sphi 0, %s39
      %s51 = sphi 0, %s53
      %s54 = sphi 0, %s51
      %s55 = sphi 0, %s54
      %s71 = sphi 0, %s55
      %s83 = sphi 0, %s85
      %s86 = sphi 0, %s83
      %s87 = sphi 0, %s86
      %s103 = sphi 0, %s87
      %s115 = sphi 0, %s117
      %s118 = sphi 0, %s115
      %s119 = sphi 0, %s118
      %s135 = sphi 0, %s119
      %s145 = sphi 0, %s147
      %s148 = sphi 0, %s145
      %s149 = sphi 0, %s148
      %s165 = sphi 0, %s149
      %s169 = sphi 0, %s169
      %s171 = sphi 0, %s169
      %s172 = sphi 0, %s171
      %s186 = sphi 0, %s172
      %s190 = sphi 0, %s190
      %s192 = sphi 0, %s190
      %s193 = sphi 0, %s192
      %s207 = sphi 0, %s193
      %s213 = sphi 0, %s215
      %s216 = sphi 0, %s213
      %s217 = sphi 0, %s216
      %s233 = sphi 0, %s217
    $region4: #{tpu_custom_call.1} parent=1 // loop_header_branch
      %32 = sbr.rel (%p30) target = $region8
    $region5: #{tpu_custom_call.1} parent=1 // loop_body
      %s34 = ssub.s32 %s29, 1
      %s35 = ssub.s32 %s29, 2
      %s42 = sadd.s32 1, %s37
      %p43 = scmp.ge.s32.totalorder %s42, 2
      %s44 = scalar_select %p43, 0, %s42
      %s45 = sadd.s32 1, %s36
      %s46 = scalar_select %p43, %s45, %s36
      %p47 = scmp.ge.s32.totalorder %s46, 1
      %s48 = scalar_select %p47, 0, %s46
      %s49 = ssub.s32 %s36, %s48
      %p50 = scmp.eq.s32.totalorder %s49, 0
      %s52 = sadd.s32 %s51, 1
      %s53 = scalar_select %p50, %s51, %s52
      %p56 = pneg %p50
      %p57 = scmp.eq.s32.totalorder %s29, 1
      %p58 = por %p56, %p57
      %p59 = scmp.ne.s32.totalorder %s51, %s54
      %p60 = scmp.eq.s32.totalorder %s29, 0
      %p61 = por %p59, %p60
      %p62 = scmp.ne.s32.totalorder %s51, %s54
      %p63 = scmp.eq.s32.totalorder %s34, 1
      %p64 = por %p62, %p63
      %p65 = scmp.ne.s32.totalorder %s54, %s55
      %p66 = scmp.eq.s32.totalorder %s34, 0
      %p67 = por %p65, %p66
      %p68 = scmp.ne.s32.totalorder %s54, %s55
      %p69 = scmp.eq.s32.totalorder %s35, 1
      %p70 = por %p68, %p69
      %p72 = scmp.ne.s32.totalorder %s55, %s71
      %p73 = scmp.eq.s32.totalorder %s35, 0
      %p74 = por %p72, %p73
      %s75 = sadd.s32 %s37, 2
      %s76 = sld [smem:[#allocation4 + %s75]]
      %s77 = sadd.s32 %s44, 2
      %s78 = sld [smem:[#allocation4 + %s77]]
      %s79 = ssub.s32 %s76, %s78
      %s80 = ssub.s32 %s36, %s48
      %s81 = sor.u32 %s79, %s80
      %p82 = scmp.eq.s32.totalorder %s81, 0
      %s84 = sadd.s32 %s83, 1
      %s85 = scalar_select %p82, %s83, %s84
      %p88 = pneg %p82
      %p89 = scmp.eq.s32.totalorder %s29, 1
      %p90 = por %p88, %p89
      %p91 = scmp.ne.s32.totalorder %s83, %s86
      %p92 = scmp.eq.s32.totalorder %s29, 0
      %p93 = por %p91, %p92
      %p94 = scmp.ne.s32.totalorder %s83, %s86
      %p95 = scmp.eq.s32.totalorder %s34, 1
      %p96 = por %p94, %p95
      %p97 = scmp.ne.s32.totalorder %s86, %s87
      %p98 = scmp.eq.s32.totalorder %s34, 0
      %p99 = por %p97, %p98
      %p100 = scmp.ne.s32.totalorder %s86, %s87
      %p101 = scmp.eq.s32.totalorder %s35, 1
      %p102 = por %p100, %p101
      %p104 = scmp.ne.s32.totalorder %s87, %s103
      %p105 = scmp.eq.s32.totalorder %s35, 0
      %p106 = por %p104, %p105
      %s107 = sadd.s32 %s37, 2
      %s108 = sld [smem:[#allocation4 + %s107]]
      %s109 = sadd.s32 %s44, 2
      %s110 = sld [smem:[#allocation4 + %s109]]
      %s111 = ssub.s32 %s108, %s110
      %s112 = ssub.s32 %s36, %s48
      %s113 = sor.u32 %s111, %s112
      %p114 = scmp.eq.s32.totalorder %s113, 0
      %s116 = sadd.s32 %s115, 1
      %s117 = scalar_select %p114, %s115, %s116
      %p120 = pneg %p114
      %p121 = scmp.eq.s32.totalorder %s29, 1
      %p122 = por %p120, %p121
      %p123 = scmp.ne.s32.totalorder %s115, %s118
      %p124 = scmp.eq.s32.totalorder %s29, 0
      %p125 = por %p123, %p124
      %p126 = scmp.ne.s32.totalorder %s115, %s118
      %p127 = scmp.eq.s32.totalorder %s34, 1
      %p128 = por %p126, %p127
      %p129 = scmp.ne.s32.totalorder %s118, %s119
      %p130 = scmp.eq.s32.totalorder %s34, 0
      %p131 = por %p129, %p130
      %p132 = scmp.ne.s32.totalorder %s118, %s119
      %p133 = scmp.eq.s32.totalorder %s35, 1
      %p134 = por %p132, %p133
      %p136 = scmp.ne.s32.totalorder %s119, %s135
      %p137 = scmp.eq.s32.totalorder %s35, 0
      %p138 = por %p136, %p137
      %s139 = sadd.s32 %s37, 2
      %s140 = sld [smem:[#allocation4 + %s139]]
      %s141 = sadd.s32 %s44, 2
      %s142 = sld [smem:[#allocation4 + %s141]]
      %s143 = ssub.s32 %s140, %s142
      %p144 = scmp.eq.s32.totalorder %s143, 0
      %s146 = sadd.s32 %s145, 1
      %s147 = scalar_select %p144, %s145, %s146
      %p150 = pneg %p144
      %p151 = scmp.eq.s32.totalorder %s29, 1
      %p152 = por %p150, %p151
      %p153 = scmp.ne.s32.totalorder %s145, %s148
      %p154 = scmp.eq.s32.totalorder %s29, 0
      %p155 = por %p153, %p154
      %p156 = scmp.ne.s32.totalorder %s145, %s148
      %p157 = scmp.eq.s32.totalorder %s34, 1
      %p158 = por %p156, %p157
      %p159 = scmp.ne.s32.totalorder %s148, %s149
      %p160 = scmp.eq.s32.totalorder %s34, 0
      %p161 = por %p159, %p160
      %p162 = scmp.ne.s32.totalorder %s148, %s149
      %p163 = scmp.eq.s32.totalorder %s35, 1
      %p164 = por %p162, %p163
      %p166 = scmp.ne.s32.totalorder %s149, %s165
      %p167 = scmp.eq.s32.totalorder %s35, 0
      %p168 = por %p166, %p167
      %s170 = sadd.s32 %s169, 1
      %p173 = scmp.eq.s32.totalorder %s29, 1
      %p174 = scmp.ne.s32.totalorder %s169, %s171
      %p175 = scmp.eq.s32.totalorder %s29, 0
      %p176 = por %p174, %p175
      %p177 = scmp.ne.s32.totalorder %s169, %s171
      %p178 = scmp.eq.s32.totalorder %s34, 1
      %p179 = por %p177, %p178
      %p180 = scmp.ne.s32.totalorder %s171, %s172
      %p181 = scmp.eq.s32.totalorder %s34, 0
      %p182 = por %p180, %p181
      %p183 = scmp.ne.s32.totalorder %s171, %s172
      %p184 = scmp.eq.s32.totalorder %s35, 1
      %p185 = por %p183, %p184
      %p187 = scmp.ne.s32.totalorder %s172, %s186
      %p188 = scmp.eq.s32.totalorder %s35, 0
      %p189 = por %p187, %p188
      %s191 = sadd.s32 %s190, 1
      %p194 = scmp.eq.s32.totalorder %s29, 1
      %p195 = scmp.ne.s32.totalorder %s190, %s192
      %p196 = scmp.eq.s32.totalorder %s29, 0
      %p197 = por %p195, %p196
      %p198 = scmp.ne.s32.totalorder %s190, %s192
      %p199 = scmp.eq.s32.totalorder %s34, 1
      %p200 = por %p198, %p199
      %p201 = scmp.ne.s32.totalorder %s192, %s193
      %p202 = scmp.eq.s32.totalorder %s34, 0
      %p203 = por %p201, %p202
      %p204 = scmp.ne.s32.totalorder %s192, %s193
      %p205 = scmp.eq.s32.totalorder %s35, 1
      %p206 = por %p204, %p205
      %p208 = scmp.ne.s32.totalorder %s193, %s207
      %p209 = scmp.eq.s32.totalorder %s35, 0
      %p210 = por %p208, %p209
      %s211 = ssub.s32 %s36, %s48
      %p212 = scmp.eq.s32.totalorder %s211, 0
      %s214 = sadd.s32 %s213, 1
      %s215 = scalar_select %p212, %s213, %s214
      %p218 = pneg %p212
      %p219 = scmp.eq.s32.totalorder %s29, 1
      %p220 = por %p218, %p219
      %p221 = scmp.ne.s32.totalorder %s213, %s216
      %p222 = scmp.eq.s32.totalorder %s29, 0
      %p223 = por %p221, %p222
      %p224 = scmp.ne.s32.totalorder %s213, %s216
      %p225 = scmp.eq.s32.totalorder %s34, 1
      %p226 = por %p224, %p225
      %p227 = scmp.ne.s32.totalorder %s216, %s217
      %p228 = scmp.eq.s32.totalorder %s34, 0
      %p229 = por %p227, %p228
      %p230 = scmp.ne.s32.totalorder %s216, %s217
      %p231 = scmp.eq.s32.totalorder %s35, 1
      %p232 = por %p230, %p231
      %p234 = scmp.ne.s32.totalorder %s217, %s233
      %p235 = scmp.eq.s32.totalorder %s35, 0
      %p236 = por %p234, %p235
      %p237 = scmp.le.s32.totalorder 1, %s29
      %p238 = scmp.lt.s32.totalorder %s29, 3
      %p239 = pnand %p237, %p238
      %p240 = pneg %p239
      // Predicated region
      $region9: #{tpu_custom_call.1} parent=5 // pred_check
        _
      $region10: #{tpu_custom_call.1} parent=5 // pred_check_branch
        %242 = sbr.rel (%p239) target = $region12
      $region11: #{tpu_custom_call.1} parent=5 // pred_region
        %s243 = ssub.s32 %s29, 1
        // Predicated region
        $region13: #{tpu_custom_call.1} parent=11 // pred_check
          %p244 = pneg %p67
        $region14: #{tpu_custom_call.1} parent=11 // pred_check_branch
          %246 = sbr.rel (%p244) target = $region16
        $region15: #{tpu_custom_call.1} parent=11 // pred_region
          %248 = vsyncadd [#allocation6], 0
          %s249 = smul.addr %s38, 8
          %s250 = scalar_lea.hbm %s1, %s249
          %s252 = sshll.u32 %s250, 4
          %s253 = int_to_ptr.hbm [resolvable:$true] %s252
          %s254 = sshll.u32 [#allocation5], 4
          %s255 = int_to_ptr.vmem [resolvable:$true] %s254
          %257 = dma.hbm_to_vmem [thread:$0]  %s253, 128, %s255, [#allocation6]
        $region16: #{tpu_custom_call.1} parent=11 // pred_fallthru
          _
        // Predicated region
        $region17: #{tpu_custom_call.1} parent=11 // pred_check
          %p258 = pneg %p182
        $region18: #{tpu_custom_call.1} parent=11 // pred_check_branch
          %260 = sbr.rel (%p258) target = $region20
        $region19: #{tpu_custom_call.1} parent=11 // pred_region
          %262 = vsyncadd [#allocation12], 0
          %s263 = sshll.u32 %s5, 4
          %s264 = int_to_ptr.hbm [resolvable:$true] %s263
          %s265 = sshll.u32 [#allocation13], 4
          %s266 = int_to_ptr.vmem [resolvable:$true] %s265
          %271 = dma.hbm_to_vmem [thread:$0]  %s264, 256, %s266, [#allocation12], 64, 64, 4
        $region20: #{tpu_custom_call.1} parent=11 // pred_fallthru
          _
        // Predicated region
        $region21: #{tpu_custom_call.1} parent=11 // pred_check
          %p272 = pneg %p203
        $region22: #{tpu_custom_call.1} parent=11 // pred_check_branch
          %274 = sbr.rel (%p272) target = $region24
        $region23: #{tpu_custom_call.1} parent=11 // pred_region
          _
        $region24: #{tpu_custom_call.1} parent=11 // pred_fallthru
          _
      $region12: #{tpu_custom_call.1} parent=5 // pred_fallthru
        _
      %p275 = scmp.lt.s32.totalorder %s29, 2
      // Predicated region
      $region25: #{tpu_custom_call.1} parent=5 // pred_check
        %p276 = pneg %p275
      $region26: #{tpu_custom_call.1} parent=5 // pred_check_branch
        %278 = sbr.rel (%p276) target = $region28
      $region27: #{tpu_custom_call.1} parent=5 // pred_region
        // Predicated region
        $region29: #{tpu_custom_call.1} parent=27 // pred_check
          %p279 = pneg %p93
        $region30: #{tpu_custom_call.1} parent=27 // pred_check_branch
          %281 = sbr.rel (%p279) target = $region32
        $region31: #{tpu_custom_call.1} parent=27 // pred_region
          %s282 = sand.u32 %s29, 1
          %s283 = scalar_lea.sflag [#allocation9], %s282
          %s284 = sand.u32 %s83, 1
          %s285 = smul.addr %s284, 2
          %s286 = scalar_lea.vmem [#allocation8], %s285
          %s287 = sadd.s32 %s37, 2
          %s288 = sld [smem:[#allocation4 + %s287]]
          %290 = vsyncadd %s283, 0
          %s291 = sadd.s32 %s36, %s288
          %s292 = smul.addr %s291, 2
          %s293 = scalar_lea.hbm %s2, %s292
          %s295 = sshll.u32 %s293, 4
          %s296 = int_to_ptr.hbm [resolvable:$true] %s295
          %s297 = sshll.u32 %s286, 4
          %s298 = int_to_ptr.vmem [resolvable:$true] %s297
          %300 = dma.hbm_to_vmem [thread:$0]  %s296, 32, %s298, %s283
        $region32: #{tpu_custom_call.1} parent=27 // pred_fallthru
          _
        // Predicated region
        $region33: #{tpu_custom_call.1} parent=27 // pred_check
          %p301 = pneg %p125
        $region34: #{tpu_custom_call.1} parent=27 // pred_check_branch
          %303 = sbr.rel (%p301) target = $region36
        $region35: #{tpu_custom_call.1} parent=27 // pred_region
          %s304 = sand.u32 %s29, 1
          %s305 = scalar_lea.sflag [#allocation9], %s304
          %s306 = sand.u32 %s115, 1
          %s307 = smul.addr %s306, 2
          %s308 = scalar_lea.vmem [#allocation10], %s307
          %s309 = sadd.s32 %s37, 2
          %s310 = sld [smem:[#allocation4 + %s309]]
          %312 = vsyncadd %s305, 0
          %s313 = sadd.s32 %s36, %s310
          %s314 = smul.addr %s313, 2
          %s315 = scalar_lea.hbm %s3, %s314
          %s317 = sshll.u32 %s315, 4
          %s318 = int_to_ptr.hbm [resolvable:$true] %s317
          %s319 = sshll.u32 %s308, 4
          %s320 = int_to_ptr.vmem [resolvable:$true] %s319
          %322 = dma.hbm_to_vmem [thread:$0]  %s318, 32, %s320, %s305
        $region36: #{tpu_custom_call.1} parent=27 // pred_fallthru
          _
        // Predicated region
        $region37: #{tpu_custom_call.1} parent=27 // pred_check
          %p323 = pneg %p155
        $region38: #{tpu_custom_call.1} parent=27 // pred_check_branch
          %325 = sbr.rel (%p323) target = $region40
        $region39: #{tpu_custom_call.1} parent=27 // pred_region
          %s326 = sand.u32 %s29, 1
          %s327 = scalar_lea.sflag [#allocation12], %s326
          %s328 = sand.u32 %s145, 1
          %s329 = smul.addr %s328, 4
          %s330 = scalar_lea.vmem [#allocation11], %s329
          %s331 = sadd.s32 %s37, 2
          %s332 = sld [smem:[#allocation4 + %s331]]
          %334 = vsyncadd %s327, 0
          %s335 = smul.addr %s332, 4
          %s336 = scalar_lea.hbm %s4, %s335
          %s338 = sshll.u32 %s336, 4
          %s339 = int_to_ptr.hbm [resolvable:$true] %s338
          %s340 = sshll.u32 %s330, 4
          %s341 = int_to_ptr.vmem [resolvable:$true] %s340
          %343 = dma.hbm_to_vmem [thread:$0]  %s339, 64, %s341, %s327
        $region40: #{tpu_custom_call.1} parent=27 // pred_fallthru
          _
      $region28: #{tpu_custom_call.1} parent=5 // pred_fallthru
        _
      %p344 = scmp.le.s32.totalorder 1, %s29
      %p345 = scmp.lt.s32.totalorder %s29, 3
      %p346 = pnand %p344, %p345
      %p347 = pneg %p346
      // Predicated region
      $region41: #{tpu_custom_call.1} parent=5 // pred_check
        _
      $region42: #{tpu_custom_call.1} parent=5 // pred_check_branch
        %349 = sbr.rel (%p346) target = $region44
      $region43: #{tpu_custom_call.1} parent=5 // pred_region
        %s350 = ssub.s32 %s29, 1
        // Predicated region
        $region45: #{tpu_custom_call.1} parent=43 // pred_check
          %p351 = pneg %p67
        $region46: #{tpu_custom_call.1} parent=43 // pred_check_branch
          %353 = sbr.rel (%p351) target = $region48
        $region47: #{tpu_custom_call.1} parent=43 // pred_region
          %355 = dma.done [#allocation6], 128
        $region48: #{tpu_custom_call.1} parent=43 // pred_fallthru
          _
        %s356 = sand.u32 %s34, 1
        %s357 = scalar_lea.sflag [#allocation9], %s356
        %s358 = sand.u32 %s86, 1
        %s359 = smul.addr %s358, 2
        %s360 = scalar_lea.vmem [#allocation8], %s359
        // Predicated region
        $region49: #{tpu_custom_call.1} parent=43 // pred_check
          %p361 = pneg %p99
        $region50: #{tpu_custom_call.1} parent=43 // pred_check_branch
          %363 = sbr.rel (%p361) target = $region52
        $region51: #{tpu_custom_call.1} parent=43 // pred_region
          %365 = dma.done %s357, 32
        $region52: #{tpu_custom_call.1} parent=43 // pred_fallthru
          _
        %s366 = sand.u32 %s34, 1
        %s367 = scalar_lea.sflag [#allocation9], %s366
        %s368 = sand.u32 %s118, 1
        %s369 = smul.addr %s368, 2
        %s370 = scalar_lea.vmem [#allocation10], %s369
        // Predicated region
        $region53: #{tpu_custom_call.1} parent=43 // pred_check
          %p371 = pneg %p131
        $region54: #{tpu_custom_call.1} parent=43 // pred_check_branch
          %373 = sbr.rel (%p371) target = $region56
        $region55: #{tpu_custom_call.1} parent=43 // pred_region
          %375 = dma.done %s367, 32
        $region56: #{tpu_custom_call.1} parent=43 // pred_fallthru
          _
        %s376 = sand.u32 %s34, 1
        %s377 = scalar_lea.sflag [#allocation12], %s376
        %s378 = sand.u32 %s148, 1
        %s379 = smul.addr %s378, 4
        %s380 = scalar_lea.vmem [#allocation11], %s379
        // Predicated region
        $region57: #{tpu_custom_call.1} parent=43 // pred_check
          %p381 = pneg %p161
        $region58: #{tpu_custom_call.1} parent=43 // pred_check_branch
          %383 = sbr.rel (%p381) target = $region60
        $region59: #{tpu_custom_call.1} parent=43 // pred_region
          %385 = dma.done %s377, 64
        $region60: #{tpu_custom_call.1} parent=43 // pred_fallthru
          _
        // Predicated region
        $region61: #{tpu_custom_call.1} parent=43 // pred_check
          %p386 = pneg %p182
        $region62: #{tpu_custom_call.1} parent=43 // pred_check_branch
          %388 = sbr.rel (%p386) target = $region64
        $region63: #{tpu_custom_call.1} parent=43 // pred_region
          %390 = dma.done [#allocation12], 256
        $region64: #{tpu_custom_call.1} parent=43 // pred_fallthru
          _
        %p391 = pneg %p67
        %p392 = pneg %p64
        %s393 = sand.u32 %s34, 1
        %s394 = scalar_lea.sflag [#allocation9], %s393
        %s395 = sand.u32 %s86, 1
        %s396 = smul.addr %s395, 2
        %s397 = scalar_lea.vmem [#allocation8], %s396
        %p398 = pneg %p99
        %p399 = pneg %p96
        %s400 = sand.u32 %s34, 1
        %s401 = scalar_lea.sflag [#allocation9], %s400
        %s402 = sand.u32 %s118, 1
        %s403 = smul.addr %s402, 2
        %s404 = scalar_lea.vmem [#allocation10], %s403
        %p405 = pneg %p131
        %p406 = pneg %p128
        %s407 = sand.u32 %s34, 1
        %s408 = scalar_lea.sflag [#allocation12], %s407
        %s409 = sand.u32 %s148, 1
        %s410 = smul.addr %s409, 4
        %s411 = scalar_lea.vmem [#allocation11], %s410
        %p412 = pneg %p161
        %p413 = pneg %p158
        %p414 = pneg %p182
        %p415 = pneg %p179
        %p416 = pneg %p203
        %p417 = pneg %p200
        %p418 = pneg %p229
        %p419 = pneg %p226
        %s420 = sadd.s32 %s39, 2
        %s421 = sld [smem:[#allocation4 + %s420]]
        %s422 = sadd.s32 %s39, 2
        %s423 = sld [smem:[#allocation4 + %s422]]
        %s424 = sadd.s32 %s39, 2
        %s425 = sld [smem:[#allocation4 + %s424]]
        %p427 = scmp.eq.s32.totalorder %s39, 0
        %s428 = sld [smem:[#allocation4]]
        %p429 = scmp.lt.s32.totalorder %s39, %s428
        // Predicated region
        $region65: #{tpu_custom_call.1} parent=43 // pred_check
          %p430 = pneg %p429
        $region66: #{tpu_custom_call.1} parent=43 // pred_check_branch
          %432 = sbr.rel (%p430) target = $region68
        $region67: #{tpu_custom_call.1} parent=43 // pred_region
          %v433 = vld [vmem:[%s380] sm:$0xf]
          %v434 = vld [vmem:[%s370] sm:$0x3]
          %v435 = vunpack.c.0.s8 %v434
          %v436 = vcvt.s32.f32 %v435
          %v437 = vpack.c.bf16 %v436, %v436
          %v438 = vld [vmem:[%s360] sm:$0x3]
          %v439 = vunpack.c.0.s8 %v438
          %v440 = vcvt.s32.f32 %v439
          %v441 = vpack.c.bf16 %v440, %v440
          %vm442 = vcmask 64512
          %v444 = vsel %vm442, %v437, 0
          %vm446 = vcmask 1043456
          %v448 = vsel %vm446, %v433, 0
          %450 = vmatpush.bf16.msra.mxu0 0
          %451 = vmatpush.bf16.msra.mxu0 0
          %452 = vmatpush.bf16.msra.mxu0 0
          %453 = vmatpush.bf16.msra.mxu0 0
          %454 = vmatpush.bf16.msra.mxu0 0
          %455 = vmatpush.bf16.msra.mxu0 0
          %456 = vmatpush.bf16.msra.mxu0 0
          %457 = vmatpush.bf16.msra.mxu0 %v448
          %458 = vmatmul.bf16.gmra.mxu0 %v444
          %v459 = vpop.f32.mrf.mxu0
          %v460 = vadd.f32 0.0, %v459
          %v461 = vpop.f32.mrf.mxu0
          %462 = vdwg.mxu0
          %v464 = vunpack.c.l.b16 %v433
          %v465 = vpack.c.b16 %v464, %v464
          %466 = vrot.lane.b32.xlu0 %v465, 112
          %v467 = vpop.permute.xlu0 %466
          %v469 = vsel %vm442, %v441, 0
          %v472 = vsel %vm446, %v467, 0
          %474 = vmatpush.bf16.msra.mxu0 0
          %475 = vmatpush.bf16.msra.mxu0 0
          %476 = vmatpush.bf16.msra.mxu0 0
          %477 = vmatpush.bf16.msra.mxu0 0
          %478 = vmatpush.bf16.msra.mxu0 0
          %479 = vmatpush.bf16.msra.mxu0 0
          %480 = vmatpush.bf16.msra.mxu0 0
          %481 = vmatpush.bf16.msra.mxu0 %v472
          %482 = vmatmul.bf16.gmra.mxu0 %v469
          %v483 = vpop.f32.mrf.mxu0
          %v484 = vadd.f32 0.0, %v483
          %v485 = vpop.f32.mrf.mxu0
          %486 = vdwg.mxu0
          %488 = vrot.lane.b32.xlu0 %v484, 16
          %v489 = vpop.permute.xlu0 %488
          %vm491 = vcmask 130048
          %v492 = vsel %vm491, %v460, %v489
          // Predicated region
          $region69: #{tpu_custom_call.1} parent=67 // pred_check
            %p493 = pneg %p427
          $region70: #{tpu_custom_call.1} parent=67 // pred_check_branch
            %495 = sbr.rel (%p493) target = $region72
          $region71: #{tpu_custom_call.1} parent=67 // pred_region
            %vm496 = vcmask 261120
            %497 = vst.msk [vmem:[#allocation2] sm:$0xff] %vm496, %v492
          $region72: #{tpu_custom_call.1} parent=67 // pred_fallthru
            _
          %p498 = scmp.ne.s32.totalorder %s39, 0
          // Predicated region
          $region73: #{tpu_custom_call.1} parent=67 // pred_check
            %p499 = pneg %p498
          $region74: #{tpu_custom_call.1} parent=67 // pred_check_branch
            %501 = sbr.rel (%p499) target = $region76
          $region75: #{tpu_custom_call.1} parent=67 // pred_region
            %v502 = vld [vmem:[#allocation2] sm:$0xff]
            %v503 = vadd.f32 %v502, %v492
            %vm504 = vcmask 261120
            %505 = vst.msk [vmem:[#allocation2] sm:$0xff] %vm504, %v503
          $region76: #{tpu_custom_call.1} parent=67 // pred_fallthru
            _
        $region68: #{tpu_custom_call.1} parent=43 // pred_fallthru
          _
        %p506 = scmp.ge.s32.totalorder %s39, %s428
        %p507 = pnand %p427, %p506
        %p508 = pneg %p507
        // Predicated region
        $region77: #{tpu_custom_call.1} parent=43 // pred_check
          _
        $region78: #{tpu_custom_call.1} parent=43 // pred_check_branch
          %510 = sbr.rel (%p507) target = $region80
        $region79: #{tpu_custom_call.1} parent=43 // pred_region
          %vm511 = vcmask 261120
          %512 = vst.msk [vmem:[#allocation2] sm:$0xff] %vm511, 0.0
        $region80: #{tpu_custom_call.1} parent=43 // pred_fallthru
          _
        %p513 = scmp.eq.s32.totalorder %s39, 1
        // Predicated region
        $region81: #{tpu_custom_call.1} parent=43 // pred_check
          %p514 = pneg %p513
        $region82: #{tpu_custom_call.1} parent=43 // pred_check_branch
          %516 = sbr.rel (%p514) target = $region84
        $region83: #{tpu_custom_call.1} parent=43 // pred_region
          %v517 = vld [vmem:[#allocation5] sm:$0xff]
          %s518 = sld [smem:[#allocation4 + $0x1]]
          %s519 = scvt.s32.f32 %s518
          %v520 = vld [vmem:[#allocation2] sm:$0xff]
          %v521 = vstv %s519
          %v522 = vmul.f32 %v521, %v517
          %v523 = vadd.f32 %v520, %v522
          %v524 = vmax.f32 %v523, 0.0
          %v525 = vpack.c.bf16 %v524, %v524
          %v526 = vld [vmem:[#allocation13] sm:$0xf]
          %v527 = vld [vmem:[#allocation13 + $0x4] sm:$0xf]
          %v528 = vld [vmem:[#allocation13 + $0x8] sm:$0xf]
          %v529 = vld [vmem:[#allocation13 + $0xc] sm:$0xf]
          %v530 = vld [vmem:[%s6] sm:$0x1]
          %v532 = vperm.slane %v530, 0
          %v538 = vunpack.c.l.b16 %v526
          %v539 = vunpack.c.l.b16 %v527
          %v540 = vunpack.c.l.b16 %v528
          %v541 = vunpack.c.l.b16 %v529
          %v542 = vpack.c.b16 %v539, %v538
          %v543 = vpack.c.b16 %v541, %v540
          %vm546 = vcmask 261120
          %v548 = vsel %vm546, %v525, 0
          %550 = vmatpush.bf16.msra.mxu0 0
          %551 = vmatpush.bf16.msra.mxu0 0
          %552 = vmatpush.bf16.msra.mxu0 0
          %553 = vmatpush.bf16.msra.mxu0 0
          %554 = vmatpush.bf16.msra.mxu0 0
          %555 = vmatpush.bf16.msra.mxu0 0
          %556 = vmatpush.bf16.msra.mxu0 %v543
          %557 = vmatpush.bf16.msra.mxu0 %v542
          %558 = vmatmul.bf16.gmra.mxu0 %v548
          %v559 = vpop.f32.mrf.mxu0
          %v560 = vadd.f32 %v532, %v559
          %v561 = vpop.f32.mrf.mxu0
          %562 = vdwg.mxu0
          %v563 = vadd.f32 %v560, %v517
          %564 = vst.msk [vmem:[#allocation14] sm:$0xff] %vm546, %v563
        $region84: #{tpu_custom_call.1} parent=43 // pred_fallthru
          _
        // Predicated region
        $region85: #{tpu_custom_call.1} parent=43 // pred_check
          %p565 = pneg %p226
        $region86: #{tpu_custom_call.1} parent=43 // pred_check_branch
          %567 = sbr.rel (%p565) target = $region88
        $region87: #{tpu_custom_call.1} parent=43 // pred_region
          %569 = vsyncadd [#allocation7], 0
          %s570 = smul.addr %s38, 8
          %s571 = scalar_lea.hbm %s7, %s570
          %s573 = sshll.u32 [#allocation14], 4
          %s574 = int_to_ptr.vmem [resolvable:$true] %s573
          %s575 = sshll.u32 %s571, 4
          %s576 = int_to_ptr.hbm [resolvable:$true] %s575
          %578 = dma.vmem_to_hbm [thread:$0]  %s574, 128, %s576, [#allocation7]
        $region88: #{tpu_custom_call.1} parent=43 // pred_fallthru
          _
        // Predicated region
        $region89: #{tpu_custom_call.1} parent=43 // pred_check
          %p579 = pneg %p226
        $region90: #{tpu_custom_call.1} parent=43 // pred_check_branch
          %581 = sbr.rel (%p579) target = $region92
        $region91: #{tpu_custom_call.1} parent=43 // pred_region
          %583 = dma.done [#allocation7], 128
        $region92: #{tpu_custom_call.1} parent=43 // pred_fallthru
          _
      $region44: #{tpu_custom_call.1} parent=5 // pred_fallthru
        _
      %p584 = scmp.le.s32.totalorder 2, %s29
      // Predicated region
      $region93: #{tpu_custom_call.1} parent=5 // pred_check
        %p585 = pneg %p584
      $region94: #{tpu_custom_call.1} parent=5 // pred_check_branch
        %587 = sbr.rel (%p585) target = $region96
      $region95: #{tpu_custom_call.1} parent=5 // pred_region
        %s588 = ssub.s32 %s29, 2
      $region96: #{tpu_custom_call.1} parent=5 // pred_fallthru
        _
    $region6: #{tpu_custom_call.1} parent=1 // loop_footer
      %s33 = sadd.s32 1, %s29
    $region7: #{tpu_custom_call.1} parent=1 // loop_footer_branch
      %28 = sbr.rel target = $region3
    $region8: #{tpu_custom_call.1} parent=1 // loop_exit
      _
    %589 = vsyncpa [#allocation6], 1
    %s590 = scalar_lea.sflag [#allocation6], 1
    %591 = vsyncpa %s590, 1
    %592 = vsyncpa [#allocation9], 1
    %s593 = scalar_lea.sflag [#allocation9], 1
    %594 = vsyncpa %s593, 1
    %595 = vsyncpa [#allocation12], 1
    %s596 = scalar_lea.sflag [#allocation12], 1
    %597 = vsyncpa %s596, 1
    %598 = vsyncpa [#allocation7], 1
    %s599 = scalar_lea.sflag [#allocation7], 1
    %600 = vsyncpa %s599, 1

</llo_original>
